<compile_context>
chip_gen: v7x
topology: tpu7x:2x2x1
jax: 0.10.0
libtpu: 0.0.40
codegen_flags: <defaults>
</compile_context>

<pallas_src>
import jax
import jax.numpy as jnp
from jax.experimental import pallas as pl
from jax.experimental.pallas import tpu as pltpu

_LANE = 128


def _divide_kernel(inv_ref, x_ref, o_ref):
    # inv_ref: (1, 1) f32 scalar (1 / lambda_) resident in SMEM across all steps.
    # x_ref / o_ref: (block_rows, 128) VMEM tiles (auto double-buffered DMA).
    inv = inv_ref[0, 0]
    o_ref[...] = (x_ref[...] * inv).astype(o_ref.dtype)


def _round_up(a, b):
    return -(-a // b) * b


def _target_tile_bytes():
    """Per-generation tile target. Chosen so 4 double-buffered tiles fit the
    default scoped-VMEM limit of every generation (no compiler-param bump)."""
    try:
        kind = jax.devices()[0].device_kind.lower()
    except Exception:
        return 2 << 20
    if "v7" in kind:
        return 6 << 20   # v7x: 3.2 TB/s HBM -> large tiles; 4 x 6 MiB < 32 MiB scoped VMEM
    if "v6" in kind:
        return 4 << 20   # v6e: 4 x 4 MiB = 16 MiB < 32 MiB scoped VMEM
    if "v5e" in kind or "v5 lite" in kind or "v5lite" in kind:
        return 3 << 20   # v5e: 4 x 3 MiB = 12 MiB < 16 MiB default scoped VMEM
    return 2 << 20       # safe everywhere


def divide_forward(x, lambda_, tile_bytes=None):
    """Computes x / lambda_ with a Pallas TPU kernel. Works for any input shape."""
    orig_shape = x.shape
    dtype = x.dtype
    n = x.size
    if n == 0:
        return x

    itemsize = jnp.dtype(dtype).itemsize
    sublane = max(8, 32 // itemsize)          # 8 f32, 16 bf16, 32 int8/fp8

    rem = n % _LANE
    if rem == 0:
        # Fast path: reshape to a lane-dense [rows, 128] slab is a free bitcast
        # (no extra HBM traffic), and the output reshape back is free as well.
        rows = n // _LANE
        x2d = x.reshape(rows, _LANE)
    else:
        # TODO(synk): ragged sizes still take one pad+slice pass (<=127 padded
        # elements, but a full-array copy); could be removed with a manual-DMA
        # tail block if ragged inputs ever matter for this module.
        pad = _LANE - rem
        rows = (n + pad) // _LANE
        x2d = jnp.pad(x.reshape(-1), (0, pad)).reshape(rows, _LANE)

    if tile_bytes is None:
        tile_bytes = _target_tile_bytes()
    target_rows = max(sublane,
                      (tile_bytes // (_LANE * itemsize)) // sublane * sublane)

    if rows <= target_rows:
        # Single block covering the whole slab (block dim == full array dim is
        # always a legal block shape; no partial block, grid of 1).
        block_rows = rows
    else:
        # Multi-step pipelined grid; last block may be partial -> Pallas masks
        # the boundary reads/writes, so no host-side padding to a block multiple.
        block_rows = target_rows
    grid = (pl.cdiv(rows, block_rows),)

    # Hoist the divide out of the vector path: scalar reciprocal in f32.
    inv = (jnp.float32(1.0) / jnp.asarray(lambda_, jnp.float32)).reshape(1, 1)

    out2d = pl.pallas_call(
        _divide_kernel,
        out_shape=jax.ShapeDtypeStruct((rows, _LANE), dtype),
        grid_spec=pltpu.PrefetchScalarGridSpec(
            num_scalar_prefetch=0,
            grid=grid,
            in_specs=[
                # 1/lambda scalar: whole (1,1) array pinned in SMEM, constant across steps.
                pl.BlockSpec(memory_space=pltpu.MemorySpace.SMEM),
                # x tile: one (block_rows, 128) slab per grid step (double-buffered DMA).
                pl.BlockSpec((block_rows, _LANE), lambda i: (i, 0)),
            ],
            out_specs=pl.BlockSpec((block_rows, _LANE), lambda i: (i, 0)),
        ),
        compiler_params=pltpu.CompilerParams(
            dimension_semantics=("parallel",),   # shards grid steps across TCs on v7x
        ),
        cost_estimate=pl.CostEstimate(
            flops=n,
            transcendentals=0,
            bytes_accessed=2 * n * itemsize,
        ),
    )(inv, x2d)

    if rem == 0:
        return out2d.reshape(orig_shape)
    return out2d.reshape(-1)[:n].reshape(orig_shape)


if __name__ == "__main__":
    key = jax.random.PRNGKey(0)
    lambda_ = 10.0
    k1, k2, k3 = jax.random.split(key, 3)

    # 1) Small image-like input consistent with how Divide is used in the GAN code.
    x = jax.random.normal(k1, (2, 4, 16, 16), dtype=jnp.float32)
    out = jax.block_until_ready(divide_forward(x, lambda_))
    ref = x / lambda_
    assert out.shape == x.shape
    assert jnp.allclose(out, ref, atol=1e-6, rtol=1e-5), "mismatch vs reference (small)"

    # 2) Larger lane-aligned case (64*64*33 = 1056*128): exercises the zero-copy
    #    fast path (no pad/slice).
    x_big = jax.random.normal(k2, (64, 64, 33), dtype=jnp.float32)
    out_big = jax.block_until_ready(divide_forward(x_big, lambda_))
    ref_big = x_big / lambda_
    assert out_big.shape == x_big.shape
    assert jnp.allclose(out_big, ref_big, atol=1e-6, rtol=1e-5), "mismatch vs reference (big)"

    # 2b) Same data, but force a small tile so the grid has multiple steps and a
    #     partial (masked) final block — exercises the pipelined multi-block path.
    out_tiled = jax.block_until_ready(divide_forward(x_big, lambda_, tile_bytes=64 << 10))
    assert jnp.allclose(out_tiled, ref_big, atol=1e-6, rtol=1e-5), "mismatch vs reference (tiled)"

    # 3) Ragged size (231 elements, not a multiple of 128): exercises the fallback path.
    x_rag = jax.random.normal(k3, (7, 33), dtype=jnp.float32)
    out_rag = jax.block_until_ready(divide_forward(x_rag, lambda_))
    ref_rag = x_rag / lambda_
    assert out_rag.shape == x_rag.shape
    assert jnp.allclose(out_rag, ref_rag, atol=1e-6, rtol=1e-5), "mismatch vs reference (ragged)"

    print("KERNEL_OK")
</pallas_src>

<mosaic_0001>
module attributes {stable_mosaic.version = 11 : i64} {
  func.func @_divide_kernel(%arg0: i32, %arg1: memref<1x1xf32, #tpu.memory_space<smem>>, %arg2: memref<16x128xf32, #tpu.memory_space<vmem>>, %arg3: memref<16x128xf32, #tpu.memory_space<vmem>>) attributes {dimension_semantics = [#tpu.dimension_semantics<parallel>], iteration_bounds = array<i64: 1>, scalar_prefetch = 0 : i64, scratch_operands = 0 : i64, tpu.core_type = #tpu.core_type<tc>, window_params = [{transform_indices = @transform_0, window_bounds = array<i64: 1, 1>}, {transform_indices = @transform_1, window_bounds = array<i64: 16, 128>}, {transform_indices = @transform_2, window_bounds = array<i64: 16, 128>}]} {
    %c0 = arith.constant 0 : index
    %c0_0 = arith.constant 0 : index
    %0 = memref.load %arg1[%c0, %c0_0] : memref<1x1xf32, #tpu.memory_space<smem>>
    %c0_1 = arith.constant 0 : index
    %c0_2 = arith.constant 0 : index
    %1 = vector.load %arg2[%c0_1, %c0_2] : memref<16x128xf32, #tpu.memory_space<vmem>>, vector<16x128xf32>
    %2 = vector.broadcast %0 : f32 to vector<16x128xf32>
    %3 = arith.mulf %1, %2 : vector<16x128xf32>
    %c0_3 = arith.constant 0 : index
    %c0_4 = arith.constant 0 : index
    %4 = vector.load %arg3[%c0_3, %c0_4] : memref<16x128xf32, #tpu.memory_space<vmem>>, vector<16x128xf32>
    tpu.vector_store %arg3[%c0_3, %c0_4], %3 {strides = array<i32>} : memref<16x128xf32, #tpu.memory_space<vmem>>, vector<16x128xf32>,
    return
  }
  func.func @transform_0(%arg0: i32) -> (i32, i32) {
    %c0_i32 = arith.constant 0 : i32
    %c0_i32_0 = arith.constant 0 : i32
    %c0_i32_1 = arith.constant 0 : i32
    return %c0_i32, %c0_i32_0 : i32, i32
  }
  func.func @transform_1(%arg0: i32) -> (i32, i32) {
    %c0_i32 = arith.constant 0 : i32
    %c0_i32_0 = arith.constant 0 : i32
    return %arg0, %c0_i32 : i32, i32
  }
  func.func @transform_2(%arg0: i32) -> (i32, i32) {
    %c0_i32 = arith.constant 0 : i32
    %c0_i32_0 = arith.constant 0 : i32
    return %arg0, %c0_i32 : i32, i32
  }
}

</mosaic_0001>

<llo_original>
// kernel: tpu_custom_call.1
$region0: #{tpu_custom_call.1}
  #allocation0 [shape = 'u32[]', space=smem, size = 0x4, offset = 0x4, fixed_abs, tag = 'smem constant byte address 0x4 - core index']
  #allocation1 [shape = 'u32[144,128]{1,0:T(1,128)}', space=vmem, size = 0x12000, scoped, tag = 'internal scratch']
  #allocation2 [shape = 'f32[1,1]{1,0:T(1,128)S(6)}', space=smem, size = 0x200, scoped, tag = 'scoped memory for tpu_custom_call.1']
  %s0 = inlined_call_operand.<no memory space> [shape: f32[1,1], index: 0, kind: input, shape index: {}]
  %s1 = inlined_call_operand.hbm [shape: f32[16,128], index: 1, kind: input, shape index: {}]
  %s2 = inlined_call_operand.hbm [shape: f32[16,128], index: 2, kind: output, shape index: {}]
  %s3 = sld [smem:[#allocation0]]
  $region22: #{tpu_custom_call.1} parent=0
    _
  %s5 = ssub.s32 1, %s3
  %s6 = scalar_select 0, %s5, %s3
  %7 = sst [smem:[#allocation2]] %s0
  $region1: #{tpu_custom_call.1} parent=0
    #allocation3 [shape = 'u8[8192]{0}', space=vmem, size = 0x2000, scoped, tag = 'input window, operand 1, single buffered']
    #allocation4 [shape = 's32[1]{0}', space=sflag, size = 0x4, scoped, tag = 'scoped memory for tpu_custom_call.1']
    #allocation5 [shape = 's32[1]{0}', space=sflag, size = 0x4, scoped, tag = 'scoped memory for tpu_custom_call.1']
    #allocation6 [shape = 'u8[8192]{0}', space=vmem, size = 0x2000, scoped, tag = 'output window, operand 0, single buffered']
    %8 = vsyncpa [#allocation4], 0
    %9 = vsyncpa [#allocation5], 0
    // Predicated region
    $region2: #{tpu_custom_call.1} parent=1 // pred_check
      _
    $region3: #{tpu_custom_call.1} parent=1 // pred_check_branch
      %11 = sbr.rel (0) target = $region5
    $region4: #{tpu_custom_call.1} parent=1 // pred_region
      _
    $region5: #{tpu_custom_call.1} parent=1 // pred_fallthru
      _
    // Predicated region
    $region6: #{tpu_custom_call.1} parent=1 // pred_check
      _
    $region7: #{tpu_custom_call.1} parent=1 // pred_check_branch
      %13 = sbr.rel (0) target = $region9
    $region8: #{tpu_custom_call.1} parent=1 // pred_region
      %s15 = ssub.s32 256, 256
      %16 = vsyncadd [#allocation4], %s15
      %s17 = sshll.u32 [#allocation3], 4
      %s18 = int_to_ptr.vmem [resolvable:$true] %s17
      %23 = dma.hbm_to_vmem [thread:$0]  %s1, 256, %s18, [#allocation4], 128, 128, 8
    $region9: #{tpu_custom_call.1} parent=1 // pred_fallthru
      _
    // Predicated region
    $region10: #{tpu_custom_call.1} parent=1 // pred_check
      _
    $region11: #{tpu_custom_call.1} parent=1 // pred_check_branch
      %25 = sbr.rel (0) target = $region13
    $region12: #{tpu_custom_call.1} parent=1 // pred_region
      %26 = dma.done [#allocation4], 256
    $region13: #{tpu_custom_call.1} parent=1 // pred_fallthru
      _
    %s27 = sld [smem:[#allocation2]]
    %v28 = vld [vmem:[#allocation3] sm:$0xff]
    %v29 = vld [vmem:[#allocation3 + $0x8] sm:$0xff]
    %v30 = vstv %s27
    %v31 = vmul.f32 %v28, %v30
    %v32 = vmul.f32 %v29, %v30
    %33 = vst [vmem:[#allocation6] sm:$0xff] %v31
    %34 = vst [vmem:[#allocation6 + $0x8] sm:$0xff] %v32
    // Predicated region
    $region14: #{tpu_custom_call.1} parent=1 // pred_check
      _
    $region15: #{tpu_custom_call.1} parent=1 // pred_check_branch
      %36 = sbr.rel (0) target = $region17
    $region16: #{tpu_custom_call.1} parent=1 // pred_region
      %s38 = ssub.s32 256, 256
      %39 = vsyncadd [#allocation5], %s38
      %s40 = sshll.u32 [#allocation6], 4
      %s41 = int_to_ptr.vmem [resolvable:$true] %s40
      %46 = dma.vmem_to_hbm [thread:$0]  %s41, 256, %s2, [#allocation5], 128, 128, 8
    $region17: #{tpu_custom_call.1} parent=1 // pred_fallthru
      _
    // Predicated region
    $region18: #{tpu_custom_call.1} parent=1 // pred_check
      _
    $region19: #{tpu_custom_call.1} parent=1 // pred_check_branch
      %48 = sbr.rel (0) target = $region21
    $region20: #{tpu_custom_call.1} parent=1 // pred_region
      %49 = dma.done [#allocation5], 256
    $region21: #{tpu_custom_call.1} parent=1 // pred_fallthru
      _
    %50 = vsyncpa [#allocation4], 1
    %51 = vsyncpa [#allocation5], 1

</llo_original>
